<compile_context>
chip_gen: v7x
topology: tpu7x:2x2x1
jax: 0.10.0
libtpu: 0.0.40
codegen_flags: <defaults>
</compile_context>

<pallas_src>
import jax
import jax.numpy as jnp
from jax.experimental import pallas as pl
from jax.experimental.pallas import tpu as pltpu

BN_EPS = 1e-5


def _vmem_budget():
    """(vmem_limit_bytes, target rows per tile) gated on TPU generation."""
    cap = None
    try:
        cap = getattr(pltpu.get_tpu_info(), "vmem_capacity_bytes", None)
    except Exception:
        cap = None
    if cap is None:
        cap = 128 * 1024 * 1024
    if cap <= 80 * 1024 * 1024:            # v7x-class: 64 MiB VMEM per TC
        return 40 * 1024 * 1024, 12288
    return 96 * 1024 * 1024, 24576          # v5e / v6e: 128 MiB VMEM


def pillar_feature_net(x, w, b, gamma, beta, *, pillars_per_tile=None):
    """x: (B, P, N, D) f32, w: (F, D), b/gamma/beta: (F,) -> (B, P, F) f32."""
    B, P, N, D = x.shape
    F = w.shape[0]
    BP = B * P
    M = BP * N

    x = x.astype(jnp.float32)
    w_t = jnp.transpose(w).astype(jnp.float32)          # (D, F)
    gamma = gamma.astype(jnp.float32)
    beta = beta.astype(jnp.float32)
    # Linear bias cancels exactly under training-mode BatchNorm (it only shifts
    # the mean that is immediately subtracted, variance unchanged).
    del b

    vmem_limit, rows_target = _vmem_budget()
    if pillars_per_tile is None:
        pillars_per_tile = max(1, rows_target // max(N, 1))

    if BP < 8:
        tp = BP                                          # single full block
    else:
        tp = max(8, (min(pillars_per_tile, (BP // 8) * 8) // 8) * 8)
    num_tiles = -(-BP // tp)
    rows_per_tile = tp * N
    tail = (BP % tp) != 0                                # last tile partially OOB

    # Free view: contiguous merge of leading dims, no HBM copy.
    x2d = x.reshape(M, D)

    def kernel(x_ref, w_ref, mm_ref, stats_ref):
        # x_ref:     (rows_per_tile, D)  flat point rows (tp pillars * N points)
        # w_ref:     (D, F)              W^T (no bias)
        # mm_ref:    (tp, 2F)            [per-pillar max(y) | per-pillar min(y)]
        # stats_ref: (1, 2, F)           per-tile [sum(y); sum(y^2)]
        xt = x_ref[...]
        y = jnp.dot(xt, w_ref[...],
                    preferred_element_type=jnp.float32)  # (rows_per_tile, F)

        if tail:
            # Mask rows belonging to out-of-range pillars out of the moments
            # (the matching max/min output rows are OOB writes and get dropped).
            row0 = pl.program_id(0) * rows_per_tile
            rid = jax.lax.broadcasted_iota(jnp.int32, (rows_per_tile, 1), 0)
            ym = jnp.where(row0 + rid < M, y, 0.0)
        else:
            ym = y

        sy = jnp.sum(ym, axis=0, keepdims=True)          # (1, F)
        sy2 = jnp.sum(ym * ym, axis=0, keepdims=True)    # (1, F)
        stats_ref[...] = jnp.concatenate([sy, sy2], axis=0)[None]

        y3 = y.reshape(tp, N, F)                         # free when N % 8 == 0
        mm_ref[...] = jnp.concatenate(
            [jnp.max(y3, axis=1), jnp.min(y3, axis=1)], axis=1)

    mm, stats = pl.pallas_call(
        kernel,
        out_shape=(jax.ShapeDtypeStruct((BP, 2 * F), jnp.float32),
                   jax.ShapeDtypeStruct((num_tiles, 2, F), jnp.float32)),
        grid=(num_tiles,),
        in_specs=[pl.BlockSpec((rows_per_tile, D), lambda i: (i, 0)),
                  pl.BlockSpec((D, F), lambda i: (0, 0))],
        out_specs=(pl.BlockSpec((tp, 2 * F), lambda i: (i, 0)),
                   pl.BlockSpec((1, 2, F), lambda i: (i, 0, 0))),
        compiler_params=pltpu.CompilerParams(
            dimension_semantics=("parallel",),
            vmem_limit_bytes=vmem_limit),
    )(x2d, w_t)

    # ---- tiny wrapper epilogue: fold BN, exact ReLU+max via monotonicity ---- #
    sum_y = jnp.sum(stats[:, 0, :], axis=0)              # (F,)
    sum_y2 = jnp.sum(stats[:, 1, :], axis=0)              # (F,)
    mean = sum_y / M
    var = jnp.maximum(sum_y2 / M - mean * mean, 0.0)       # biased var, clamped
    inv = gamma * jax.lax.rsqrt(var + BN_EPS)               # (F,)
    shift = beta - mean * inv                               # (F,)

    ymax = mm[:, :F]
    ymin = mm[:, F:]
    out = jnp.maximum(jnp.maximum(ymax * inv + shift, 0.0),
                      jnp.maximum(ymin * inv + shift, 0.0))
    return out.reshape(B, P, F)


def pillar_feature_net_ref(x, w, b, gamma, beta):
    """Pure-JAX reference mirroring the PyTorch forward (training-mode BN)."""
    B, P, N, D = x.shape
    F = w.shape[0]
    xf = x.reshape(-1, D).astype(jnp.float32)
    y = xf @ w.T + b
    mean = jnp.mean(y, axis=0)
    var = jnp.mean((y - mean) ** 2, axis=0)
    y = (y - mean) / jnp.sqrt(var + BN_EPS) * gamma + beta
    y = jnp.maximum(y, 0.0)
    return jnp.max(y.reshape(B, P, N, F), axis=2)


if __name__ == "__main__":
    # Shapes consistent with PillarFeatureNet: D=9 input point features, F=64
    # filters.  P=13 is intentionally non-round so BP % tp != 0 exercises the
    # in-kernel tail masking and OOB-write dropping on a multi-step grid.
    B, P, N, D, F = 2, 13, 16, 9, 64

    key = jax.random.PRNGKey(0)
    kx, kw, kb, kg, kbe = jax.random.split(key, 5)

    x = jax.random.normal(kx, (B, P, N, D), dtype=jnp.float32)
    w = jax.random.normal(kw, (F, D), dtype=jnp.float32) * (1.0 / jnp.sqrt(D))
    b = jax.random.normal(kb, (F,), dtype=jnp.float32) * 0.1
    gamma = 1.0 + 0.1 * jax.random.normal(kg, (F,), dtype=jnp.float32)
    beta = 0.1 * jax.random.normal(kbe, (F,), dtype=jnp.float32)

    # Small tile on purpose: 4-step grid, partial last tile, masking path.
    out = pillar_feature_net(x, w, b, gamma, beta, pillars_per_tile=8)
    jax.block_until_ready(out)

    ref = pillar_feature_net_ref(x, w, b, gamma, beta)
    assert out.shape == (B, P, F), out.shape
    max_err = float(jnp.max(jnp.abs(out - ref)))
    assert jnp.allclose(out, ref, atol=1e-4, rtol=1e-4), max_err

    print("KERNEL_OK")
</pallas_src>

<mosaic_0001>
module attributes {stable_mosaic.version = 11 : i64} {
  func.func @kernel(%arg0: i32, %arg1: memref<128x9xf32, #tpu.memory_space<vmem>>, %arg2: memref<9x64xf32, #tpu.memory_space<vmem>>, %arg3: memref<8x128xf32, #tpu.memory_space<vmem>>, %arg4: memref<1x2x64xf32, #tpu.memory_space<vmem>>) attributes {dimension_semantics = [#tpu.dimension_semantics<parallel>], iteration_bounds = array<i64: 4>, scalar_prefetch = 0 : i64, scratch_operands = 0 : i64, tpu.core_type = #tpu.core_type<tc>, window_params = [{transform_indices = @transform_0, window_bounds = array<i64: 128, 9>}, {pipeline_mode = #tpu.pipeline_mode<synchronous>, transform_indices = @transform_1, window_bounds = array<i64: 9, 64>}, {transform_indices = @transform_2, window_bounds = array<i64: 8, 128>}, {transform_indices = @transform_3, window_bounds = array<i64: 1, 2, 64>}]} {
    %c0 = arith.constant 0 : index
    %c0_0 = arith.constant 0 : index
    %0 = vector.load %arg1[%c0, %c0_0] : memref<128x9xf32, #tpu.memory_space<vmem>>, vector<128x9xf32>
    %c0_1 = arith.constant 0 : index
    %c0_2 = arith.constant 0 : index
    %1 = vector.load %arg2[%c0_1, %c0_2] : memref<9x64xf32, #tpu.memory_space<vmem>>, vector<9x64xf32>
    %cst = arith.constant dense<0.000000e+00> : vector<128x64xf32>
    %2 = tpu.matmul %0, %1, %cst {dimension_numbers = #tpu.dot_dimension_numbers<[1], [0], [0], [1], [0, 0, 1, 1], [], []>} : vector<128x9xf32>, vector<9x64xf32>, vector<128x64xf32> -> vector<128x64xf32>
    %c128_i32 = arith.constant 128 : i32
    %3 = arith.muli %arg0, %c128_i32 : i32
    %4 = tpu.iota {dimensions = array<i32: 0>} : vector<128x1xi32>
    %5 = vector.broadcast %3 : i32 to vector<128x1xi32>
    %6 = arith.addi %5, %4 : vector<128x1xi32>
    %c416_i32 = arith.constant 416 : i32
    %7 = vector.broadcast %c416_i32 : i32 to vector<128x1xi32>
    %8 = arith.cmpi slt, %6, %7 : vector<128x1xi32>
    %cst_3 = arith.constant 0.000000e+00 : f32
    %9 = vector.shape_cast %8 : vector<128x1xi1> to vector<128x1xi1>
    %10 = vector.broadcast %9 : vector<128x1xi1> to vector<128x64xi1>
    %11 = vector.broadcast %cst_3 : f32 to vector<128x64xf32>
    %12 = arith.select %10, %2, %11 : vector<128x64xi1>, vector<128x64xf32>
    %cst_4 = arith.constant dense<0.000000e+00> : vector<64xf32>
    %13 = vector.multi_reduction <add>, %12, %cst_4 [0] : vector<128x64xf32> to vector<64xf32>
    %14 = vector.shape_cast %13 : vector<64xf32> to vector<1x64xf32>
    %15 = arith.mulf %12, %12 : vector<128x64xf32>
    %cst_5 = arith.constant dense<0.000000e+00> : vector<64xf32>
    %16 = vector.multi_reduction <add>, %15, %cst_5 [0] : vector<128x64xf32> to vector<64xf32>
    %17 = vector.shape_cast %16 : vector<64xf32> to vector<1x64xf32>
    %18 = tpu.concatenate %14, %17 in 0 : vector<1x64xf32>, vector<1x64xf32> -> vector<2x64xf32>
    %19 = vector.shape_cast %18 : vector<2x64xf32> to vector<1x2x64xf32>
    %c0_6 = arith.constant 0 : index
    %c0_7 = arith.constant 0 : index
    %c0_8 = arith.constant 0 : index
    %20 = vector.load %arg4[%c0_6, %c0_7, %c0_8] : memref<1x2x64xf32, #tpu.memory_space<vmem>>, vector<1x2x64xf32>
    tpu.vector_store %arg4[%c0_6, %c0_7, %c0_8], %19 {strides = array<i32>} : memref<1x2x64xf32, #tpu.memory_space<vmem>>, vector<1x2x64xf32>,
    %21 = vector.shape_cast %2 : vector<128x64xf32> to vector<8x16x64xf32>
    %cst_9 = arith.constant dense<0xFF800000> : vector<8x64xf32>
    %22 = vector.multi_reduction <maximumf>, %21, %cst_9 [1] : vector<8x16x64xf32> to vector<8x64xf32>
    %cst_10 = arith.constant dense<0x7F800000> : vector<8x64xf32>
    %23 = vector.multi_reduction <minimumf>, %21, %cst_10 [1] : vector<8x16x64xf32> to vector<8x64xf32>
    %24 = tpu.concatenate %22, %23 in 1 : vector<8x64xf32>, vector<8x64xf32> -> vector<8x128xf32>
    %c0_11 = arith.constant 0 : index
    %c0_12 = arith.constant 0 : index
    %25 = vector.load %arg3[%c0_11, %c0_12] : memref<8x128xf32, #tpu.memory_space<vmem>>, vector<8x128xf32>
    tpu.vector_store %arg3[%c0_11, %c0_12], %24 {strides = array<i32>} : memref<8x128xf32, #tpu.memory_space<vmem>>, vector<8x128xf32>,
    return
  }
  func.func @transform_0(%arg0: i32) -> (i32, i32) {
    %c0_i32 = arith.constant 0 : i32
    %c0_i32_0 = arith.constant 0 : i32
    return %arg0, %c0_i32 : i32, i32
  }
  func.func @transform_1(%arg0: i32) -> (i32, i32) {
    %c0_i32 = arith.constant 0 : i32
    %c0_i32_0 = arith.constant 0 : i32
    %c0_i32_1 = arith.constant 0 : i32
    return %c0_i32, %c0_i32_0 : i32, i32
  }
  func.func @transform_2(%arg0: i32) -> (i32, i32) {
    %c0_i32 = arith.constant 0 : i32
    %c0_i32_0 = arith.constant 0 : i32
    return %arg0, %c0_i32 : i32, i32
  }
  func.func @transform_3(%arg0: i32) -> (i32, i32, i32) {
    %c0_i32 = arith.constant 0 : i32
    %c0_i32_0 = arith.constant 0 : i32
    %c0_i32_1 = arith.constant 0 : i32
    return %arg0, %c0_i32, %c0_i32_0 : i32, i32, i32
  }
}

</mosaic_0001>

<llo_original>
// kernel: tpu_custom_call.1
$region0: #{tpu_custom_call.1}
  #allocation0 [shape = 'u32[]', space=smem, size = 0x4, offset = 0x4, fixed_abs, tag = 'smem constant byte address 0x4 - core index']
  #allocation1 [shape = 'u32[144,128]{1,0:T(1,128)}', space=vmem, size = 0x12000, scoped, tag = 'internal scratch']
  %s0 = inlined_call_operand.hbm [shape: f32[416,9], index: 0, kind: input, shape index: {}]
  %s1 = inlined_call_operand.hbm [shape: f32[9,64], index: 1, kind: input, shape index: {}]
  %s2 = inlined_call_operand.hbm [shape: f32[26,128], index: 2, kind: output, shape index: {0}]
  %s3 = inlined_call_operand.hbm [shape: f32[4,2,64], index: 3, kind: output, shape index: {1}]
  %4 = xla_tuple %s2, %s3
  %s5 = sld [smem:[#allocation0]]
  $region57: #{tpu_custom_call.1} parent=0
    _
  %s7 = ssub.s32 1, %s5
  %s8 = scalar_select 0, %s7, %s5
  $region1: #{tpu_custom_call.1} parent=0
    #allocation2 [shape = 'u8[131072]{0}', space=vmem, size = 0x20000, scoped, tag = 'input window, operand 0']
    #allocation3 [shape = 's32[2]{0}', space=sflag, size = 0x8, scoped, tag = 'scoped memory for tpu_custom_call.1']
    #allocation4 [shape = 's32[2]{0}', space=sflag, size = 0x8, scoped, tag = 'scoped memory for tpu_custom_call.1']
    #allocation5 [shape = 'u8[8192]{0}', space=vmem, size = 0x2000, scoped, tag = 'input window, operand 1, single buffered']
    #allocation6 [shape = 's32[1]{0}', space=sflag, size = 0x4, scoped, tag = 'scoped memory for tpu_custom_call.1']
    #allocation7 [shape = 'u8[8192]{0}', space=vmem, size = 0x2000, scoped, tag = 'output window, operand 0']
    #allocation8 [shape = 'u8[2048]{0}', space=vmem, size = 0x800, scoped, tag = 'output window, operand 1']
    #allocation9 [shape = 's32[2]{0}', space=sflag, size = 0x8, scoped, tag = 'scoped memory for tpu_custom_call.1']
    %9 = vsyncpa [#allocation3], 0
    %s10 = scalar_lea.sflag [#allocation3], 1
    %11 = vsyncpa %s10, 0
    %12 = vsyncpa [#allocation6], 0
    %13 = vsyncpa [#allocation4], 0
    %s14 = scalar_lea.sflag [#allocation4], 1
    %15 = vsyncpa %s14, 0
    %16 = vsyncpa [#allocation9], 0
    %s17 = scalar_lea.sflag [#allocation9], 1
    %18 = vsyncpa %s17, 0
    loop: start=0, step=1, limit=6
    $region2: #{tpu_custom_call.1} parent=1 // loop_pre_header
      _
    $region3: #{tpu_custom_call.1} parent=1 // loop_header
      %s20 = sphi 0, %s24
      %p21 = scmp.ge.s32.totalorder %s20, 6
      %s30 = sphi 0, %s32
      %s33 = sphi 0, %s30
      %s34 = sphi 0, %s33
      %s50 = sphi 0, %s34
      %s54 = sphi 0, %s54
      %s56 = sphi 0, %s54
      %s57 = sphi 0, %s56
      %s71 = sphi 0, %s57
      %s77 = sphi 0, %s79
      %s80 = sphi 0, %s77
      %s81 = sphi 0, %s80
      %s97 = sphi 0, %s81
      %s103 = sphi 0, %s105
      %s106 = sphi 0, %s103
      %s107 = sphi 0, %s106
      %s123 = sphi 0, %s107
    $region4: #{tpu_custom_call.1} parent=1 // loop_header_branch
      %23 = sbr.rel (%p21) target = $region8
    $region5: #{tpu_custom_call.1} parent=1 // loop_body
      %s25 = ssub.s32 %s20, 1
      %s26 = ssub.s32 %s20, 2
      %s27 = sadd.s32 %s20, 1
      %s28 = ssub.s32 %s20, %s27
      %p29 = scmp.eq.s32.totalorder %s28, 0
      %s31 = sadd.s32 %s30, 1
      %s32 = scalar_select %p29, %s30, %s31
      %p35 = pneg %p29
      %p36 = scmp.eq.s32.totalorder %s20, 3
      %p37 = por %p35, %p36
      %p38 = scmp.ne.s32.totalorder %s30, %s33
      %p39 = scmp.eq.s32.totalorder %s20, 0
      %p40 = por %p38, %p39
      %p41 = scmp.ne.s32.totalorder %s30, %s33
      %p42 = scmp.eq.s32.totalorder %s25, 3
      %p43 = por %p41, %p42
      %p44 = scmp.ne.s32.totalorder %s33, %s34
      %p45 = scmp.eq.s32.totalorder %s25, 0
      %p46 = por %p44, %p45
      %p47 = scmp.ne.s32.totalorder %s33, %s34
      %p48 = scmp.eq.s32.totalorder %s26, 3
      %p49 = por %p47, %p48
      %p51 = scmp.ne.s32.totalorder %s34, %s50
      %p52 = scmp.eq.s32.totalorder %s26, 0
      %p53 = por %p51, %p52
      %s55 = sadd.s32 %s54, 1
      %p58 = scmp.eq.s32.totalorder %s20, 3
      %p59 = scmp.ne.s32.totalorder %s54, %s56
      %p60 = scmp.eq.s32.totalorder %s20, 0
      %p61 = por %p59, %p60
      %p62 = scmp.ne.s32.totalorder %s54, %s56
      %p63 = scmp.eq.s32.totalorder %s25, 3
      %p64 = por %p62, %p63
      %p65 = scmp.ne.s32.totalorder %s56, %s57
      %p66 = scmp.eq.s32.totalorder %s25, 0
      %p67 = por %p65, %p66
      %p68 = scmp.ne.s32.totalorder %s56, %s57
      %p69 = scmp.eq.s32.totalorder %s26, 3
      %p70 = por %p68, %p69
      %p72 = scmp.ne.s32.totalorder %s57, %s71
      %p73 = scmp.eq.s32.totalorder %s26, 0
      %p74 = por %p72, %p73
      %s75 = ssub.s32 %s20, %s27
      %p76 = scmp.eq.s32.totalorder %s75, 0
      %s78 = sadd.s32 %s77, 1
      %s79 = scalar_select %p76, %s77, %s78
      %p82 = pneg %p76
      %p83 = scmp.eq.s32.totalorder %s20, 3
      %p84 = por %p82, %p83
      %p85 = scmp.ne.s32.totalorder %s77, %s80
      %p86 = scmp.eq.s32.totalorder %s20, 0
      %p87 = por %p85, %p86
      %p88 = scmp.ne.s32.totalorder %s77, %s80
      %p89 = scmp.eq.s32.totalorder %s25, 3
      %p90 = por %p88, %p89
      %p91 = scmp.ne.s32.totalorder %s80, %s81
      %p92 = scmp.eq.s32.totalorder %s25, 0
      %p93 = por %p91, %p92
      %p94 = scmp.ne.s32.totalorder %s80, %s81
      %p95 = scmp.eq.s32.totalorder %s26, 3
      %p96 = por %p94, %p95
      %p98 = scmp.ne.s32.totalorder %s81, %s97
      %p99 = scmp.eq.s32.totalorder %s26, 0
      %p100 = por %p98, %p99
      %s101 = ssub.s32 %s20, %s27
      %p102 = scmp.eq.s32.totalorder %s101, 0
      %s104 = sadd.s32 %s103, 1
      %s105 = scalar_select %p102, %s103, %s104
      %p108 = pneg %p102
      %p109 = scmp.eq.s32.totalorder %s20, 3
      %p110 = por %p108, %p109
      %p111 = scmp.ne.s32.totalorder %s103, %s106
      %p112 = scmp.eq.s32.totalorder %s20, 0
      %p113 = por %p111, %p112
      %p114 = scmp.ne.s32.totalorder %s103, %s106
      %p115 = scmp.eq.s32.totalorder %s25, 3
      %p116 = por %p114, %p115
      %p117 = scmp.ne.s32.totalorder %s106, %s107
      %p118 = scmp.eq.s32.totalorder %s25, 0
      %p119 = por %p117, %p118
      %p120 = scmp.ne.s32.totalorder %s106, %s107
      %p121 = scmp.eq.s32.totalorder %s26, 3
      %p122 = por %p120, %p121
      %p124 = scmp.ne.s32.totalorder %s107, %s123
      %p125 = scmp.eq.s32.totalorder %s26, 0
      %p126 = por %p124, %p125
      %p127 = scmp.le.s32.totalorder 1, %s20
      %p128 = scmp.lt.s32.totalorder %s20, 5
      %p129 = pnand %p127, %p128
      %p130 = pneg %p129
      // Predicated region
      $region9: #{tpu_custom_call.1} parent=5 // pred_check
        _
      $region10: #{tpu_custom_call.1} parent=5 // pred_check_branch
        %132 = sbr.rel (%p129) target = $region12
      $region11: #{tpu_custom_call.1} parent=5 // pred_region
        %s133 = ssub.s32 %s20, 1
        // Predicated region
        $region13: #{tpu_custom_call.1} parent=11 // pred_check
          %p134 = pneg %p67
        $region14: #{tpu_custom_call.1} parent=11 // pred_check_branch
          %136 = sbr.rel (%p134) target = $region16
        $region15: #{tpu_custom_call.1} parent=11 // pred_region
          %s138 = ssub.s32 256, 256
          %139 = vsyncadd [#allocation6], %s138
          %s140 = sshll.u32 [#allocation5], 4
          %s141 = int_to_ptr.vmem [resolvable:$true] %s140
          %146 = dma.hbm_to_vmem [thread:$0]  %s1, 256, %s141, [#allocation6], 128, 128, 8
        $region16: #{tpu_custom_call.1} parent=11 // pred_fallthru
          _
      $region12: #{tpu_custom_call.1} parent=5 // pred_fallthru
        _
      %p147 = scmp.lt.s32.totalorder %s20, 4
      // Predicated region
      $region17: #{tpu_custom_call.1} parent=5 // pred_check
        %p148 = pneg %p147
      $region18: #{tpu_custom_call.1} parent=5 // pred_check_branch
        %150 = sbr.rel (%p148) target = $region20
      $region19: #{tpu_custom_call.1} parent=5 // pred_region
        // Predicated region
        $region21: #{tpu_custom_call.1} parent=19 // pred_check
          %p151 = pneg %p40
        $region22: #{tpu_custom_call.1} parent=19 // pred_check_branch
          %153 = sbr.rel (%p151) target = $region24
        $region23: #{tpu_custom_call.1} parent=19 // pred_region
          %s154 = sand.u32 %s30, 1
          %s155 = scalar_lea.sflag [#allocation3], %s154
          %s156 = sand.u32 %s30, 1
          %s157 = smul.addr %s156, 128
          %s158 = scalar_lea.vmem [#allocation2], %s157
          %s159 = smul.u32 16, %s20
          %s160 = ssub.s32 52, %s159
          %p161 = scmp.lt.s32.totalorder %s160, 16
          %s162 = scalar_select %p161, %s160, 16
          %s163 = smul.u32 128, %s162
          %s165 = ssub.s32 2048, %s163
          %166 = vsyncadd %s155, %s165
          %p167 = scmp.ne.s32.totalorder 0, %s163
          %s168 = smul.addr %s159, 128
          %s169 = scalar_lea.hbm %s0, %s168
          %s170 = smul.u32 8, %s162
          %s171 = sshll.u32 %s158, 4
          %s172 = int_to_ptr.vmem [resolvable:$true] %s171
          %s173 = sshll.u32 %s170, 4
          %177 = dma.hbm_to_vmem [thread:$0]  (%p167), %s169, %s173, %s172, %s155, 128, 128, 8
        $region24: #{tpu_custom_call.1} parent=19 // pred_fallthru
          _
      $region20: #{tpu_custom_call.1} parent=5 // pred_fallthru
        _
      %p178 = scmp.le.s32.totalorder 1, %s20
      %p179 = scmp.lt.s32.totalorder %s20, 5
      %p180 = pnand %p178, %p179
      %p181 = pneg %p180
      // Predicated region
      $region25: #{tpu_custom_call.1} parent=5 // pred_check
        _
      $region26: #{tpu_custom_call.1} parent=5 // pred_check_branch
        %183 = sbr.rel (%p180) target = $region28
      $region27: #{tpu_custom_call.1} parent=5 // pred_region
        %s184 = ssub.s32 %s20, 1
        %s185 = sand.u32 %s33, 1
        %s186 = scalar_lea.sflag [#allocation3], %s185
        %s187 = sand.u32 %s33, 1
        %s188 = smul.addr %s187, 128
        %s189 = scalar_lea.vmem [#allocation2], %s188
        // Predicated region
        $region29: #{tpu_custom_call.1} parent=27 // pred_check
          %p190 = pneg %p46
        $region30: #{tpu_custom_call.1} parent=27 // pred_check_branch
          %192 = sbr.rel (%p190) target = $region32
        $region31: #{tpu_custom_call.1} parent=27 // pred_region
          %193 = dma.done %s186, 2048
        $region32: #{tpu_custom_call.1} parent=27 // pred_fallthru
          _
        // Predicated region
        $region33: #{tpu_custom_call.1} parent=27 // pred_check
          %p194 = pneg %p67
        $region34: #{tpu_custom_call.1} parent=27 // pred_check_branch
          %196 = sbr.rel (%p194) target = $region36
        $region35: #{tpu_custom_call.1} parent=27 // pred_region
          %197 = dma.done [#allocation6], 256
        $region36: #{tpu_custom_call.1} parent=27 // pred_fallthru
          _
        %s198 = sand.u32 %s33, 1
        %s199 = scalar_lea.sflag [#allocation3], %s198
        %s200 = sand.u32 %s33, 1
        %s201 = smul.addr %s200, 128
        %s202 = scalar_lea.vmem [#allocation2], %s201
        %p203 = pneg %p46
        %p204 = pneg %p43
        %p205 = pneg %p67
        %p206 = pneg %p64
        %p207 = pneg %p93
        %p208 = pneg %p90
        %s209 = sand.u32 %s80, 1
        %s210 = scalar_lea.sflag [#allocation4], %s209
        %s211 = sand.u32 %s80, 1
        %s212 = smul.addr %s211, 8
        %s213 = scalar_lea.vmem [#allocation7], %s212
        %p214 = pneg %p119
        %p215 = pneg %p116
        %s216 = sand.u32 %s106, 1
        %s217 = scalar_lea.sflag [#allocation9], %s216
        %s218 = sand.u32 %s106, 1
        %s219 = smul.addr %s218, 2
        %s220 = scalar_lea.vmem [#allocation8], %s219
        %s221 = smul.u32 16, %s25
        %s222 = ssub.s32 52, %s221
        %p223 = scmp.lt.s32.totalorder %s222, 16
        %s224 = scalar_select %p223, %s222, 16
        %s225 = smul.u32 128, %s224
        %v226 = vld [vmem:[%s189] sm:$0xff]
        %v227 = vld [vmem:[%s189 + $0x8] sm:$0xff]
        %v228 = vld [vmem:[%s189 + $0x10] sm:$0xff]
        %v229 = vld [vmem:[%s189 + $0x18] sm:$0xff]
        %v230 = vld [vmem:[%s189 + $0x20] sm:$0xff]
        %v231 = vld [vmem:[%s189 + $0x28] sm:$0xff]
        %v232 = vld [vmem:[%s189 + $0x30] sm:$0xff]
        %v233 = vld [vmem:[%s189 + $0x38] sm:$0xff]
        %v234 = vld [vmem:[%s189 + $0x40] sm:$0xff]
        %v235 = vld [vmem:[%s189 + $0x48] sm:$0xff]
        %v236 = vld [vmem:[%s189 + $0x50] sm:$0xff]
        %v237 = vld [vmem:[%s189 + $0x58] sm:$0xff]
        %v238 = vld [vmem:[%s189 + $0x60] sm:$0xff]
        %v239 = vld [vmem:[%s189 + $0x68] sm:$0xff]
        %v240 = vld [vmem:[%s189 + $0x70] sm:$0xff]
        %v241 = vld [vmem:[%s189 + $0x78] sm:$0xff]
        %v242 = vld [vmem:[#allocation5] sm:$0xff]
        %v243 = vld [vmem:[#allocation5 + $0x8] sm:$0x1]
        %vm244 = vcmask 72704
        %v246 = vsel %vm244, %v226, 0
        %v249 = vsel %vm244, %v227, 0
        %v252 = vsel %vm244, %v228, 0
        %v255 = vsel %vm244, %v229, 0
        %v258 = vsel %vm244, %v230, 0
        %v261 = vsel %vm244, %v231, 0
        %v264 = vsel %vm244, %v232, 0
        %v267 = vsel %vm244, %v233, 0
        %v270 = vsel %vm244, %v234, 0
        %v273 = vsel %vm244, %v235, 0
        %v276 = vsel %vm244, %v236, 0
        %v279 = vsel %vm244, %v237, 0
        %v282 = vsel %vm244, %v238, 0
        %v285 = vsel %vm244, %v239, 0
        %v288 = vsel %vm244, %v240, 0
        %v291 = vsel %vm244, %v241, 0
        %vm293 = vcmask 1040384
        %v295 = vsel %vm293, %v243, 0
        %297 = vmatprep.subr.mxu0 0.0
        %298 = vmatpush1.msra.mxu0 %v242
        %299 = vmatprep.subr.mxu0 0.0
        %300 = vmatpush1.msra.mxu0 %v295
        %301 = vmatprep.subr.mxu0 0.0
        %302 = vmatpush1.msra.mxu0 0.0
        %303 = vmatprep.subr.mxu0 0.0
        %304 = vmatpush1.msra.mxu0 0.0
        %305 = vmatprep.subr.mxu0 0.0
        %306 = vmatpush1.msra.mxu0 0.0
        %307 = vmatprep.subr.mxu0 0.0
        %308 = vmatpush1.msra.mxu0 0.0
        %309 = vmatprep.subr.mxu0 0.0
        %310 = vmatpush1.msra.mxu0 0.0
        %311 = vmatprep.subr.mxu0 0.0
        %312 = vmatpush1.msra.mxu0 0.0
        %313 = vmatprep.subr.mxu0 0.0
        %314 = vmatpush1.msra.mxu0 0.0
        %315 = vmatprep.subr.mxu0 0.0
        %316 = vmatpush1.msra.mxu0 0.0
        %317 = vmatprep.subr.mxu0 0.0
        %318 = vmatpush1.msra.mxu0 0.0
        %319 = vmatprep.subr.mxu0 0.0
        %320 = vmatpush1.msra.mxu0 0.0
        %321 = vmatprep.subr.mxu0 0.0
        %322 = vmatpush1.msra.mxu0 0.0
        %323 = vmatprep.subr.mxu0 0.0
        %324 = vmatpush1.msra.mxu0 0.0
        %325 = vmatprep.subr.mxu0 0.0
        %326 = vmatpush1.msra.mxu0 0.0
        %327 = vmatprep.subr.mxu0 0.0
        %328 = vmatpush1.msra.mxu0 0.0
        %329 = vmatprep.subr.mxu0 0.0
        %330 = vmatpush1.msra.mxu0 0.0
        %331 = vmatprep.subr.mxu0 0.0
        %332 = vmatpush1.msra.mxu0 0.0
        %333 = vmatprep.subr.mxu0 0.0
        %334 = vmatpush1.msra.mxu0 0.0
        %335 = vmatprep.subr.mxu0 0.0
        %336 = vmatpush1.msra.mxu0 0.0
        %337 = vmatprep.subr.mxu0 0.0
        %338 = vmatpush1.msra.mxu0 0.0
        %339 = vmatprep.subr.mxu0 0.0
        %340 = vmatpush1.msra.mxu0 0.0
        %341 = vmatprep.subr.mxu0 0.0
        %342 = vmatpush1.msra.mxu0 0.0
        %343 = vmatprep.subr.mxu0 0.0
        %344 = vmatpush1.msra.mxu0 0.0
        %345 = vmatprep.subr.mxu0 0.0
        %346 = vmatpush1.msra.mxu0 0.0
        %347 = vmatprep.subr.mxu0 0.0
        %348 = vmatpush1.msra.mxu0 0.0
        %349 = vmatprep.subr.mxu0 0.0
        %350 = vmatpush1.msra.mxu0 0.0
        %351 = vmatprep.subr.mxu0 0.0
        %352 = vmatpush1.msra.mxu0 0.0
        %353 = vmatprep.subr.mxu0 0.0
        %354 = vmatpush1.msra.mxu0 0.0
        %355 = vmatprep.subr.mxu0 0.0
        %356 = vmatpush1.msra.mxu0 0.0
        %357 = vmatprep.subr.mxu0 0.0
        %358 = vmatpush1.msra.mxu0 0.0
        %359 = vmatprep.subr.mxu0 0.0
        %360 = vmatpush1.msra.mxu0 0.0
        %361 = vmatprep.mubr.f32.mxu0 0.0
        %362 = vmatmul.mubr.f32.gmra.mrb[0].mxu0 %v246
        %v363 = vpop.f32.mrb[0].mxu0
        %v364 = vadd.f32 0.0, %v363
        %v365 = vpop.f32.mrb[0].mxu0
        %366 = vmatprep.mubr.f32.mxu0 0.0
        %367 = vmatmul.mubr.f32.gmra.mrb[0].mxu0 %v249
        %v368 = vpop.f32.mrb[0].mxu0
        %v369 = vadd.f32 0.0, %v368
        %v370 = vpop.f32.mrb[0].mxu0
        %371 = vmatprep.mubr.f32.mxu0 0.0
        %372 = vmatmul.mubr.f32.gmra.mrb[0].mxu0 %v252
        %v373 = vpop.f32.mrb[0].mxu0
        %v374 = vadd.f32 0.0, %v373
        %v375 = vpop.f32.mrb[0].mxu0
        %376 = vmatprep.mubr.f32.mxu0 0.0
        %377 = vmatmul.mubr.f32.gmra.mrb[0].mxu0 %v255
        %v378 = vpop.f32.mrb[0].mxu0
        %v379 = vadd.f32 0.0, %v378
        %v380 = vpop.f32.mrb[0].mxu0
        %381 = vmatprep.mubr.f32.mxu0 0.0
        %382 = vmatmul.mubr.f32.gmra.mrb[0].mxu0 %v258
        %v383 = vpop.f32.mrb[0].mxu0
        %v384 = vadd.f32 0.0, %v383
        %v385 = vpop.f32.mrb[0].mxu0
        %386 = vmatprep.mubr.f32.mxu0 0.0
        %387 = vmatmul.mubr.f32.gmra.mrb[0].mxu0 %v261
        %v388 = vpop.f32.mrb[0].mxu0
        %v389 = vadd.f32 0.0, %v388
        %v390 = vpop.f32.mrb[0].mxu0
        %391 = vmatprep.mubr.f32.mxu0 0.0
        %392 = vmatmul.mubr.f32.gmra.mrb[0].mxu0 %v264
        %v393 = vpop.f32.mrb[0].mxu0
        %v394 = vadd.f32 0.0, %v393
        %v395 = vpop.f32.mrb[0].mxu0
        %396 = vmatprep.mubr.f32.mxu0 0.0
        %397 = vmatmul.mubr.f32.gmra.mrb[0].mxu0 %v267
        %v398 = vpop.f32.mrb[0].mxu0
        %v399 = vadd.f32 0.0, %v398
        %v400 = vpop.f32.mrb[0].mxu0
        %401 = vmatprep.mubr.f32.mxu0 0.0
        %402 = vmatmul.mubr.f32.gmra.mrb[0].mxu0 %v270
        %v403 = vpop.f32.mrb[0].mxu0
        %v404 = vadd.f32 0.0, %v403
        %v405 = vpop.f32.mrb[0].mxu0
        %406 = vmatprep.mubr.f32.mxu0 0.0
        %407 = vmatmul.mubr.f32.gmra.mrb[0].mxu0 %v273
        %v408 = vpop.f32.mrb[0].mxu0
        %v409 = vadd.f32 0.0, %v408
        %v410 = vpop.f32.mrb[0].mxu0
        %411 = vmatprep.mubr.f32.mxu0 0.0
        %412 = vmatmul.mubr.f32.gmra.mrb[0].mxu0 %v276
        %v413 = vpop.f32.mrb[0].mxu0
        %v414 = vadd.f32 0.0, %v413
        %v415 = vpop.f32.mrb[0].mxu0
        %416 = vmatprep.mubr.f32.mxu0 0.0
        %417 = vmatmul.mubr.f32.gmra.mrb[0].mxu0 %v279
        %v418 = vpop.f32.mrb[0].mxu0
        %v419 = vadd.f32 0.0, %v418
        %v420 = vpop.f32.mrb[0].mxu0
        %421 = vmatprep.mubr.f32.mxu0 0.0
        %422 = vmatmul.mubr.f32.gmra.mrb[0].mxu0 %v282
        %v423 = vpop.f32.mrb[0].mxu0
        %v424 = vadd.f32 0.0, %v423
        %v425 = vpop.f32.mrb[0].mxu0
        %426 = vmatprep.mubr.f32.mxu0 0.0
        %427 = vmatmul.mubr.f32.gmra.mrb[0].mxu0 %v285
        %v428 = vpop.f32.mrb[0].mxu0
        %v429 = vadd.f32 0.0, %v428
        %v430 = vpop.f32.mrb[0].mxu0
        %431 = vmatprep.mubr.f32.mxu0 0.0
        %432 = vmatmul.mubr.f32.gmra.mrb[0].mxu0 %v288
        %v433 = vpop.f32.mrb[0].mxu0
        %v434 = vadd.f32 0.0, %v433
        %v435 = vpop.f32.mrb[0].mxu0
        %436 = vmatprep.mubr.f32.mxu0 0.0
        %437 = vmatmul.mubr.f32.gmra.mrb[0].mxu0 %v291
        %v438 = vpop.f32.mrb[0].mxu0
        %v439 = vadd.f32 0.0, %v438
        %v440 = vpop.f32.mrb[0].mxu0
        %441 = vdwg.mxu0
        %s442 = smul.u32 %s25, 128
        %v443 = vlaneseq
        %v444 = vshrl.u32 %v443, 7
        %v445 = vadd.s32 %v444, 8
        %v446 = vadd.s32 %v444, 16
        %v447 = vadd.s32 %v444, 24
        %v448 = vadd.s32 %v444, 32
        %v449 = vadd.s32 %v444, 40
        %v450 = vadd.s32 %v444, 48
        %v451 = vadd.s32 %v444, 56
        %v452 = vadd.s32 %v444, 64
        %v453 = vadd.s32 %v444, 72
        %v454 = vadd.s32 %v444, 80
        %v455 = vadd.s32 %v444, 88
        %v456 = vadd.s32 %v444, 96
        %v457 = vadd.s32 %v444, 104
        %v458 = vadd.s32 %v444, 112
        %v459 = vadd.s32 %v444, 120
        %v460 = vstv %s442
        %v461 = vadd.s32 %v460, %v444
        %v462 = vadd.s32 %v460, %v445
        %v463 = vadd.s32 %v460, %v446
        %v464 = vadd.s32 %v460, %v447
        %v465 = vadd.s32 %v460, %v448
        %v466 = vadd.s32 %v460, %v449
        %v467 = vadd.s32 %v460, %v450
        %v468 = vadd.s32 %v460, %v451
        %v469 = vadd.s32 %v460, %v452
        %v470 = vadd.s32 %v460, %v453
        %v471 = vadd.s32 %v460, %v454
        %v472 = vadd.s32 %v460, %v455
        %v473 = vadd.s32 %v460, %v456
        %v474 = vadd.s32 %v460, %v457
        %v475 = vadd.s32 %v460, %v458
        %v476 = vadd.s32 %v460, %v459
        %vm477 = vcmp.lt.s32.totalorder %v461, 416
        %vm478 = vcmp.lt.s32.totalorder %v462, 416
        %vm479 = vcmp.lt.s32.totalorder %v463, 416
        %vm480 = vcmp.lt.s32.totalorder %v464, 416
        %vm481 = vcmp.lt.s32.totalorder %v465, 416
        %vm482 = vcmp.lt.s32.totalorder %v466, 416
        %vm483 = vcmp.lt.s32.totalorder %v467, 416
        %vm484 = vcmp.lt.s32.totalorder %v468, 416
        %vm485 = vcmp.lt.s32.totalorder %v469, 416
        %vm486 = vcmp.lt.s32.totalorder %v470, 416
        %vm487 = vcmp.lt.s32.totalorder %v471, 416
        %vm488 = vcmp.lt.s32.totalorder %v472, 416
        %vm489 = vcmp.lt.s32.totalorder %v473, 416
        %vm490 = vcmp.lt.s32.totalorder %v474, 416
        %vm491 = vcmp.lt.s32.totalorder %v475, 416
        %vm492 = vcmp.lt.s32.totalorder %v476, 416
        %v493 = vsel %vm477, 1, 0
        %v494 = vsel %vm478, 1, 0
        %v495 = vsel %vm479, 1, 0
        %v496 = vsel %vm480, 1, 0
        %v497 = vsel %vm481, 1, 0
        %v498 = vsel %vm482, 1, 0
        %v499 = vsel %vm483, 1, 0
        %v500 = vsel %vm484, 1, 0
        %v501 = vsel %vm485, 1, 0
        %v502 = vsel %vm486, 1, 0
        %v503 = vsel %vm487, 1, 0
        %v504 = vsel %vm488, 1, 0
        %v505 = vsel %vm489, 1, 0
        %v506 = vsel %vm490, 1, 0
        %v507 = vsel %vm491, 1, 0
        %v508 = vsel %vm492, 1, 0
        %vm509 = vcmp.eq.s32.totalorder %v493, 1
        %vm510 = vcmp.eq.s32.totalorder %v494, 1
        %vm511 = vcmp.eq.s32.totalorder %v495, 1
        %vm512 = vcmp.eq.s32.totalorder %v496, 1
        %vm513 = vcmp.eq.s32.totalorder %v497, 1
        %vm514 = vcmp.eq.s32.totalorder %v498, 1
        %vm515 = vcmp.eq.s32.totalorder %v499, 1
        %vm516 = vcmp.eq.s32.totalorder %v500, 1
        %vm517 = vcmp.eq.s32.totalorder %v501, 1
        %vm518 = vcmp.eq.s32.totalorder %v502, 1
        %vm519 = vcmp.eq.s32.totalorder %v503, 1
        %vm520 = vcmp.eq.s32.totalorder %v504, 1
        %vm521 = vcmp.eq.s32.totalorder %v505, 1
        %vm522 = vcmp.eq.s32.totalorder %v506, 1
        %vm523 = vcmp.eq.s32.totalorder %v507, 1
        %vm524 = vcmp.eq.s32.totalorder %v508, 1
        %v525 = vsel %vm509, %v364, 0.0
        %v526 = vsel %vm510, %v369, 0.0
        %v527 = vsel %vm511, %v374, 0.0
        %v528 = vsel %vm512, %v379, 0.0
        %v529 = vsel %vm513, %v384, 0.0
        %v530 = vsel %vm514, %v389, 0.0
        %v531 = vsel %vm515, %v394, 0.0
        %v532 = vsel %vm516, %v399, 0.0
        %v533 = vsel %vm517, %v404, 0.0
        %v534 = vsel %vm518, %v409, 0.0
        %v535 = vsel %vm519, %v414, 0.0
        %v536 = vsel %vm520, %v419, 0.0
        %v537 = vsel %vm521, %v424, 0.0
        %v538 = vsel %vm522, %v429, 0.0
        %v539 = vsel %vm523, %v434, 0.0
        %v540 = vsel %vm524, %v439, 0.0
        %vm541 = vcmask 523264
        %v542 = vsel %vm541, %v525, 0.0
        %v543 = vsel %vm541, %v526, 0.0
        %v544 = vadd.f32 %v542, %v543
        %v545 = vsel %vm541, %v527, 0.0
        %v546 = vadd.f32 %v544, %v545
        %v547 = vsel %vm541, %v528, 0.0
        %v548 = vadd.f32 %v546, %v547
        %v549 = vsel %vm541, %v529, 0.0
        %v550 = vadd.f32 %v548, %v549
        %v551 = vsel %vm541, %v530, 0.0
        %v552 = vadd.f32 %v550, %v551
        %v553 = vsel %vm541, %v531, 0.0
        %v554 = vadd.f32 %v552, %v553
        %v555 = vsel %vm541, %v532, 0.0
        %v556 = vadd.f32 %v554, %v555
        %v557 = vsel %vm541, %v533, 0.0
        %v558 = vadd.f32 %v556, %v557
        %v559 = vsel %vm541, %v534, 0.0
        %v560 = vadd.f32 %v558, %v559
        %v561 = vsel %vm541, %v535, 0.0
        %v562 = vadd.f32 %v560, %v561
        %v563 = vsel %vm541, %v536, 0.0
        %v564 = vadd.f32 %v562, %v563
        %v565 = vsel %vm541, %v537, 0.0
        %v566 = vadd.f32 %v564, %v565
        %v567 = vsel %vm541, %v538, 0.0
        %v568 = vadd.f32 %v566, %v567
        %v569 = vsel %vm541, %v539, 0.0
        %v570 = vadd.f32 %v568, %v569
        %v571 = vsel %vm541, %v540, 0.0
        %v572 = vadd.f32 %v570, %v571
        %v573 = vrot.slane %v572, 4
        %v574 = vadd.f32 %v572, %v573
        %v575 = vrot.slane %v574, 2
        %v576 = vadd.f32 %v574, %v575
        %v577 = vrot.slane %v576, 1
        %v578 = vadd.f32 %v576, %v577
        %v579 = vmul.f32 %v525, %v525
        %v580 = vmul.f32 %v526, %v526
        %v581 = vmul.f32 %v527, %v527
        %v582 = vmul.f32 %v528, %v528
        %v583 = vmul.f32 %v529, %v529
        %v584 = vmul.f32 %v530, %v530
        %v585 = vmul.f32 %v531, %v531
        %v586 = vmul.f32 %v532, %v532
        %v587 = vmul.f32 %v533, %v533
        %v588 = vmul.f32 %v534, %v534
        %v589 = vmul.f32 %v535, %v535
        %v590 = vmul.f32 %v536, %v536
        %v591 = vmul.f32 %v537, %v537
        %v592 = vmul.f32 %v538, %v538
        %v593 = vmul.f32 %v539, %v539
        %v594 = vmul.f32 %v540, %v540
        %v595 = vsel %vm541, %v579, 0.0
        %v596 = vsel %vm541, %v580, 0.0
        %v597 = vadd.f32 %v595, %v596
        %v598 = vsel %vm541, %v581, 0.0
        %v599 = vadd.f32 %v597, %v598
        %v600 = vsel %vm541, %v582, 0.0
        %v601 = vadd.f32 %v599, %v600
        %v602 = vsel %vm541, %v583, 0.0
        %v603 = vadd.f32 %v601, %v602
        %v604 = vsel %vm541, %v584, 0.0
        %v605 = vadd.f32 %v603, %v604
        %v606 = vsel %vm541, %v585, 0.0
        %v607 = vadd.f32 %v605, %v606
        %v608 = vsel %vm541, %v586, 0.0
        %v609 = vadd.f32 %v607, %v608
        %v610 = vsel %vm541, %v587, 0.0
        %v611 = vadd.f32 %v609, %v610
        %v612 = vsel %vm541, %v588, 0.0
        %v613 = vadd.f32 %v611, %v612
        %v614 = vsel %vm541, %v589, 0.0
        %v615 = vadd.f32 %v613, %v614
        %v616 = vsel %vm541, %v590, 0.0
        %v617 = vadd.f32 %v615, %v616
        %v618 = vsel %vm541, %v591, 0.0
        %v619 = vadd.f32 %v617, %v618
        %v620 = vsel %vm541, %v592, 0.0
        %v621 = vadd.f32 %v619, %v620
        %v622 = vsel %vm541, %v593, 0.0
        %v623 = vadd.f32 %v621, %v622
        %v624 = vsel %vm541, %v594, 0.0
        %v625 = vadd.f32 %v623, %v624
        %v626 = vrot.slane %v625, 4
        %v627 = vadd.f32 %v625, %v626
        %v628 = vrot.slane %v627, 2
        %v629 = vadd.f32 %v627, %v628
        %v630 = vrot.slane %v629, 1
        %v631 = vadd.f32 %v629, %v630
        %v632 = vsel %vm293, %v578, %v631
        %vm633 = vcmask 517120
        %634 = vst.msk [vmem:[%s220] sm:$0x3] %vm633, %v632
        %v635 = vsel %vm541, %v364, -inf
        %v636 = vsel %vm541, %v369, -inf
        %v637 = vmax.f32 %v635, %v636
        %v638 = vrot.slane %v637, 4
        %v639 = vmax.f32 %v637, %v638
        %v640 = vrot.slane %v639, 2
        %v641 = vmax.f32 %v639, %v640
        %v642 = vrot.slane %v641, 1
        %v643 = vmax.f32 %v641, %v642
        %v644 = vsel %vm541, %v374, -inf
        %v645 = vsel %vm541, %v379, -inf
        %v646 = vmax.f32 %v644, %v645
        %v647 = vrot.slane %v646, 4
        %v648 = vmax.f32 %v646, %v647
        %v649 = vrot.slane %v648, 2
        %v650 = vmax.f32 %v648, %v649
        %v651 = vrot.slane %v650, 1
        %v652 = vmax.f32 %v650, %v651
        %v653 = vsel %vm541, %v384, -inf
        %v654 = vsel %vm541, %v389, -inf
        %v655 = vmax.f32 %v653, %v654
        %v656 = vrot.slane %v655, 4
        %v657 = vmax.f32 %v655, %v656
        %v658 = vrot.slane %v657, 2
        %v659 = vmax.f32 %v657, %v658
        %v660 = vrot.slane %v659, 1
        %v661 = vmax.f32 %v659, %v660
        %v662 = vsel %vm541, %v394, -inf
        %v663 = vsel %vm541, %v399, -inf
        %v664 = vmax.f32 %v662, %v663
        %v665 = vrot.slane %v664, 4
        %v666 = vmax.f32 %v664, %v665
        %v667 = vrot.slane %v666, 2
        %v668 = vmax.f32 %v666, %v667
        %v669 = vrot.slane %v668, 1
        %v670 = vmax.f32 %v668, %v669
        %v671 = vsel %vm541, %v404, -inf
        %v672 = vsel %vm541, %v409, -inf
        %v673 = vmax.f32 %v671, %v672
        %v674 = vrot.slane %v673, 4
        %v675 = vmax.f32 %v673, %v674
        %v676 = vrot.slane %v675, 2
        %v677 = vmax.f32 %v675, %v676
        %v678 = vrot.slane %v677, 1
        %v679 = vmax.f32 %v677, %v678
        %v680 = vsel %vm541, %v414, -inf
        %v681 = vsel %vm541, %v419, -inf
        %v682 = vmax.f32 %v680, %v681
        %v683 = vrot.slane %v682, 4
        %v684 = vmax.f32 %v682, %v683
        %v685 = vrot.slane %v684, 2
        %v686 = vmax.f32 %v684, %v685
        %v687 = vrot.slane %v686, 1
        %v688 = vmax.f32 %v686, %v687
        %v689 = vsel %vm541, %v424, -inf
        %v690 = vsel %vm541, %v429, -inf
        %v691 = vmax.f32 %v689, %v690
        %v692 = vrot.slane %v691, 4
        %v693 = vmax.f32 %v691, %v692
        %v694 = vrot.slane %v693, 2
        %v695 = vmax.f32 %v693, %v694
        %v696 = vrot.slane %v695, 1
        %v697 = vmax.f32 %v695, %v696
        %v698 = vsel %vm541, %v434, -inf
        %v699 = vsel %vm541, %v439, -inf
        %v700 = vmax.f32 %v698, %v699
        %v701 = vrot.slane %v700, 4
        %v702 = vmax.f32 %v700, %v701
        %v703 = vrot.slane %v702, 2
        %v704 = vmax.f32 %v702, %v703
        %v705 = vrot.slane %v704, 1
        %v706 = vmax.f32 %v704, %v705
        %v707 = vsel %vm541, %v364, inf
        %v708 = vsel %vm541, %v369, inf
        %v709 = vmin.f32 %v707, %v708
        %v710 = vrot.slane %v709, 4
        %v711 = vmin.f32 %v709, %v710
        %v712 = vrot.slane %v711, 2
        %v713 = vmin.f32 %v711, %v712
        %v714 = vrot.slane %v713, 1
        %v715 = vmin.f32 %v713, %v714
        %v716 = vsel %vm541, %v374, inf
        %v717 = vsel %vm541, %v379, inf
        %v718 = vmin.f32 %v716, %v717
        %v719 = vrot.slane %v718, 4
        %v720 = vmin.f32 %v718, %v719
        %v721 = vrot.slane %v720, 2
        %v722 = vmin.f32 %v720, %v721
        %v723 = vrot.slane %v722, 1
        %v724 = vmin.f32 %v722, %v723
        %v725 = vsel %vm541, %v384, inf
        %v726 = vsel %vm541, %v389, inf
        %v727 = vmin.f32 %v725, %v726
        %v728 = vrot.slane %v727, 4
        %v729 = vmin.f32 %v727, %v728
        %v730 = vrot.slane %v729, 2
        %v731 = vmin.f32 %v729, %v730
        %v732 = vrot.slane %v731, 1
        %v733 = vmin.f32 %v731, %v732
        %v734 = vsel %vm541, %v394, inf
        %v735 = vsel %vm541, %v399, inf
        %v736 = vmin.f32 %v734, %v735
        %v737 = vrot.slane %v736, 4
        %v738 = vmin.f32 %v736, %v737
        %v739 = vrot.slane %v738, 2
        %v740 = vmin.f32 %v738, %v739
        %v741 = vrot.slane %v740, 1
        %v742 = vmin.f32 %v740, %v741
        %v743 = vsel %vm541, %v404, inf
        %v744 = vsel %vm541, %v409, inf
        %v745 = vmin.f32 %v743, %v744
        %v746 = vrot.slane %v745, 4
        %v747 = vmin.f32 %v745, %v746
        %v748 = vrot.slane %v747, 2
        %v749 = vmin.f32 %v747, %v748
        %v750 = vrot.slane %v749, 1
        %v751 = vmin.f32 %v749, %v750
        %v752 = vsel %vm541, %v414, inf
        %v753 = vsel %vm541, %v419, inf
        %v754 = vmin.f32 %v752, %v753
        %v755 = vrot.slane %v754, 4
        %v756 = vmin.f32 %v754, %v755
        %v757 = vrot.slane %v756, 2
        %v758 = vmin.f32 %v756, %v757
        %v759 = vrot.slane %v758, 1
        %v760 = vmin.f32 %v758, %v759
        %v761 = vsel %vm541, %v424, inf
        %v762 = vsel %vm541, %v429, inf
        %v763 = vmin.f32 %v761, %v762
        %v764 = vrot.slane %v763, 4
        %v765 = vmin.f32 %v763, %v764
        %v766 = vrot.slane %v765, 2
        %v767 = vmin.f32 %v765, %v766
        %v768 = vrot.slane %v767, 1
        %v769 = vmin.f32 %v767, %v768
        %v770 = vsel %vm541, %v434, inf
        %v771 = vsel %vm541, %v439, inf
        %v772 = vmin.f32 %v770, %v771
        %v773 = vrot.slane %v772, 4
        %v774 = vmin.f32 %v772, %v773
        %v775 = vrot.slane %v774, 2
        %v776 = vmin.f32 %v774, %v775
        %v777 = vrot.slane %v776, 1
        %v778 = vmin.f32 %v776, %v777
        %vm787 = vcmask 1041409
        %v788 = vsel %vm787, %v652, %v643
        %vm789 = vcmask 1042434
        %v790 = vsel %vm789, %v661, %v788
        %vm791 = vcmask 1043459
        %v792 = vsel %vm791, %v670, %v790
        %vm793 = vcmask 1044484
        %v794 = vsel %vm793, %v679, %v792
        %vm795 = vcmask 1045509
        %v796 = vsel %vm795, %v688, %v794
        %vm797 = vcmask 1046534
        %v798 = vsel %vm797, %v697, %v796
        %vm799 = vcmask 1047559
        %v800 = vsel %vm799, %v706, %v798
        %v810 = vsel %vm787, %v724, %v715
        %v811 = vsel %vm789, %v733, %v810
        %v812 = vsel %vm791, %v742, %v811
        %v813 = vsel %vm793, %v751, %v812
        %v814 = vsel %vm795, %v760, %v813
        %v815 = vsel %vm797, %v769, %v814
        %v816 = vsel %vm799, %v778, %v815
        %817 = vrot.lane.b32.xlu0 %v816, 64
        %v818 = vpop.permute.xlu0 %817
        %v820 = vsel %vm541, %v800, %v818
        %821 = vst [vmem:[%s213] sm:$0xff] %v820
        %s822 = sand.u32 %s80, 1
        %s823 = scalar_lea.sflag [#allocation4], %s822
        %s824 = sand.u32 %s80, 1
        %s825 = smul.addr %s824, 8
        %s826 = scalar_lea.vmem [#allocation7], %s825
        %s827 = sand.u32 %s106, 1
        %s828 = scalar_lea.sflag [#allocation9], %s827
        %s829 = sand.u32 %s106, 1
        %s830 = smul.addr %s829, 2
        %s831 = scalar_lea.vmem [#allocation8], %s830
        // Predicated region
        $region37: #{tpu_custom_call.1} parent=27 // pred_check
          %p832 = pneg %p90
        $region38: #{tpu_custom_call.1} parent=27 // pred_check_branch
          %834 = sbr.rel (%p832) target = $region40
        $region39: #{tpu_custom_call.1} parent=27 // pred_region
          %s836 = ssub.s32 128, 128
          %837 = vsyncadd %s823, %s836
          %s838 = smul.addr %s25, 128
          %s839 = scalar_lea.hbm %s2, %s838
          %s841 = sshll.u32 %s826, 4
          %s842 = int_to_ptr.vmem [resolvable:$true] %s841
          %844 = dma.vmem_to_hbm [thread:$0]  %s842, 128, %s839, %s823
        $region40: #{tpu_custom_call.1} parent=27 // pred_fallthru
          _
        // Predicated region
        $region41: #{tpu_custom_call.1} parent=27 // pred_check
          %p845 = pneg %p116
        $region42: #{tpu_custom_call.1} parent=27 // pred_check_branch
          %847 = sbr.rel (%p845) target = $region44
        $region43: #{tpu_custom_call.1} parent=27 // pred_region
          %s849 = ssub.s32 32, 32
          %850 = vsyncadd %s828, %s849
          %s851 = smul.addr %s25, 32
          %s852 = scalar_lea.hbm %s3, %s851
          %s854 = sshll.u32 %s831, 4
          %s855 = int_to_ptr.vmem [resolvable:$true] %s854
          %857 = dma.vmem_to_hbm [thread:$0]  %s855, 32, %s852, %s828
        $region44: #{tpu_custom_call.1} parent=27 // pred_fallthru
          _
      $region28: #{tpu_custom_call.1} parent=5 // pred_fallthru
        _
      %p858 = scmp.le.s32.totalorder 2, %s20
      // Predicated region
      $region45: #{tpu_custom_call.1} parent=5 // pred_check
        %p859 = pneg %p858
      $region46: #{tpu_custom_call.1} parent=5 // pred_check_branch
        %861 = sbr.rel (%p859) target = $region48
      $region47: #{tpu_custom_call.1} parent=5 // pred_region
        %s862 = ssub.s32 %s20, 2
        // Predicated region
        $region49: #{tpu_custom_call.1} parent=47 // pred_check
          %p863 = pneg %p96
        $region50: #{tpu_custom_call.1} parent=47 // pred_check_branch
          %865 = sbr.rel (%p863) target = $region52
        $region51: #{tpu_custom_call.1} parent=47 // pred_region
          %s866 = sand.u32 %s81, 1
          %s867 = scalar_lea.sflag [#allocation4], %s866
          %s868 = sand.u32 %s81, 1
          %s869 = smul.addr %s868, 8
          %s870 = scalar_lea.vmem [#allocation7], %s869
          %871 = dma.done %s867, 128
        $region52: #{tpu_custom_call.1} parent=47 // pred_fallthru
          _
        // Predicated region
        $region53: #{tpu_custom_call.1} parent=47 // pred_check
          %p872 = pneg %p122
        $region54: #{tpu_custom_call.1} parent=47 // pred_check_branch
          %874 = sbr.rel (%p872) target = $region56
        $region55: #{tpu_custom_call.1} parent=47 // pred_region
          %s875 = sand.u32 %s107, 1
          %s876 = scalar_lea.sflag [#allocation9], %s875
          %s877 = sand.u32 %s107, 1
          %s878 = smul.addr %s877, 2
          %s879 = scalar_lea.vmem [#allocation8], %s878
          %880 = dma.done %s876, 32
        $region56: #{tpu_custom_call.1} parent=47 // pred_fallthru
          _
      $region48: #{tpu_custom_call.1} parent=5 // pred_fallthru
        _
    $region6: #{tpu_custom_call.1} parent=1 // loop_footer
      %s24 = sadd.s32 1, %s20
    $region7: #{tpu_custom_call.1} parent=1 // loop_footer_branch
      %19 = sbr.rel target = $region3
    $region8: #{tpu_custom_call.1} parent=1 // loop_exit
      _
    %881 = vsyncpa [#allocation3], 1
    %s882 = scalar_lea.sflag [#allocation3], 1
    %883 = vsyncpa %s882, 1
    %884 = vsyncpa [#allocation6], 1
    %885 = vsyncpa [#allocation4], 1
    %s886 = scalar_lea.sflag [#allocation4], 1
    %887 = vsyncpa %s886, 1
    %888 = vsyncpa [#allocation9], 1
    %s889 = scalar_lea.sflag [#allocation9], 1
    %890 = vsyncpa %s889, 1

</llo_original>
